<compile_context>
chip_gen: v7x
topology: tpu7x:2x2x1
jax: 0.10.0
libtpu: 0.0.40
codegen_flags: <defaults>
</compile_context>

<pallas_src>
import functools

import jax
import jax.numpy as jnp
from jax.experimental import pallas as pl
from jax.experimental.pallas import tpu as pltpu


# ----------------------------- kernels -------------------------------------


def _softmax_store(logits, o_ref):
    # Numerically stable softmax over the group axis (last dim of `logits`),
    # stored into the (possibly lane-packed) output layout. Exact divide: the
    # kernel is HBM-bound so the extra EUP/VPU cost is hidden, and the
    # probabilities sum to 1 for any downstream sampling/renormalization.
    m = jnp.max(logits, axis=-1, keepdims=True)
    e = jnp.exp(logits - m)
    p = e / jnp.sum(e, axis=-1, keepdims=True)
    o_ref[...] = p.reshape(o_ref.shape).astype(o_ref.dtype)


def _gp_kernel_plain(x_ref, w1_ref, b1_ref, w2_ref, b2_ref, o_ref):
    # x_ref: [bm, T]; weights resident (constant index_map).
    hdn = jnp.dot(x_ref[...], w1_ref[...],
                  preferred_element_type=jnp.float32) + b1_ref[...]
    hdn = jnp.maximum(hdn, 0.0)
    logits = jnp.dot(hdn.astype(w2_ref.dtype), w2_ref[...],
                     preferred_element_type=jnp.float32) + b2_ref[...]
    _softmax_store(logits, o_ref)


def _gp_kernel_plain_h(x_ref, h_ref, w1x_ref, w1h_ref, b1_ref, w2_ref, b2_ref,
                       o_ref):
    # h supplied separately, W1 split -> no HBM-side concat of activations.
    hdn = (jnp.dot(x_ref[...], w1x_ref[...], preferred_element_type=jnp.float32)
           + jnp.dot(h_ref[...], w1h_ref[...], preferred_element_type=jnp.float32)
           + b1_ref[...])
    hdn = jnp.maximum(hdn, 0.0)
    logits = jnp.dot(hdn.astype(w2_ref.dtype), w2_ref[...],
                     preferred_element_type=jnp.float32) + b2_ref[...]
    _softmax_store(logits, o_ref)


def _gp_kernel_packed(x_ref, w1_ref, b1_ref, w2_ref, b2_ref, gsum_ref, o_ref):
    # Lane-dense variant: each 128-lane row of x_ref holds rpl = 128 // T
    # logical rows, and the weights are block-diagonal (kron(I_rpl, W)), so
    # both matmuls and the final store operate directly on the packed layout —
    # no in-kernel relayout / reshape anywhere.
    hdn = jnp.dot(x_ref[...], w1_ref[...],
                  preferred_element_type=jnp.float32) + b1_ref[...]
    hdn = jnp.maximum(hdn, 0.0)
    logits = jnp.dot(hdn.astype(w2_ref.dtype), w2_ref[...],
                     preferred_element_type=jnp.float32) + b2_ref[...]
    # Group softmax in packed layout: softmax is shift-invariant per group, so
    # subtracting the packed-row max (which upper-bounds every group's max) is
    # exact; per-group sums come from one small matmul on the otherwise-idle MXU.
    # TODO(synk): if logits of rows sharing a lane-row can differ by > ~80,
    # switch to a true per-group max for full underflow safety.
    m = jnp.max(logits, axis=-1, keepdims=True)
    e = jnp.exp(logits - m)
    denom = jnp.dot(e, gsum_ref[...], preferred_element_type=jnp.float32)
    o_ref[...] = (e / denom).astype(o_ref.dtype)


# ----------------------------- helpers --------------------------------------


def _num_tensorcores():
    # v7x has 2 TensorCores per chip (shard the parallel grid axis); v5e/v6e: 1.
    try:
        kind = jax.devices()[0].device_kind.lower()
    except Exception:
        return 1
    return 2 if "7" in kind else 1


def _min_sublanes(dtype):
    # Native sublane packing: 8 rows/vreg for 4-byte, 16 for 2-byte, 32 for 1-byte.
    return 8 * max(1, 4 // jnp.dtype(dtype).itemsize)


def _choose_block_m(M, per_row_bytes, weight_bytes, row_multiple, num_tc):
    """Biggest row tile that fits a ~20 MiB working-set budget (lane-padded,
    double-buffered model), is a multiple of `row_multiple`, and keeps an
    even >=2-step grid on 2-TensorCore chips."""
    budget = max(per_row_bytes, 20 * 1024 * 1024 - weight_bytes)
    cap = min(4096, max(row_multiple, budget // per_row_bytes))
    cap = max(row_multiple, (cap // row_multiple) * row_multiple)
    if M <= row_multiple:
        return M                       # single tile; block rows == full dim
    target = M                         # single-TC: one big tile when it fits
    if num_tc >= 2 and M >= 512:
        target = pl.cdiv(M, 2)         # one tile per TensorCore
    if target > cap:
        steps = pl.cdiv(M, cap)
        if num_tc >= 2 and steps % 2:
            steps += 1                 # even step count across 2 TCs
        target = pl.cdiv(M, steps)
    bm = pl.cdiv(target, row_multiple) * row_multiple
    if bm > M:
        bm = (M // row_multiple) * row_multiple
    return max(bm, row_multiple)


# ----------------------------- wrapper --------------------------------------


@functools.partial(jax.jit, static_argnames=("block_m",))
def group_policy_forward(x, w1, b1, w2, b2, h=None, *, block_m=None):
    """softmax(Linear2(ReLU(Linear1(cat(x, h)))), axis=-1).

    x: [batch, num, tokens] (f32 or bf16); optional h: [batch, num, h_dim].
    Weights are [in_features, out_features]. Returns [batch, num, n_groups].
    """
    B, N, T = x.shape
    Tt = w1.shape[0]                   # T (+ h_dim when h is used)
    H = w1.shape[1]
    G = w2.shape[1]
    M = B * N
    in_item = jnp.dtype(x.dtype).itemsize
    min_sub = _min_sublanes(x.dtype)
    num_tc = _num_tensorcores()

    x2d = x.reshape(M, T)
    b1r = b1.reshape(1, H)
    b2r = b2.reshape(1, G)

    # ---- lane-dense (block-diagonal) input path eligibility ------------------
    rpl = 128 // T if (h is None and T < 128 and 128 % T == 0) else 1
    packed_in = (rpl > 1 and M % rpl == 0
                 and rpl * H <= 1024 and rpl * G <= 1024)  # keep bd-weights tiny
    row_multiple = (rpl * min_sub) if packed_in else min_sub

    # ---- VMEM-aware row-tile choice (lane-padded, double-buffered model) -----
    def ru128(w):
        return ((w + 127) // 128) * 128

    per_row = (2 * ru128(Tt) * in_item        # x (+h) tiles, double-buffered
               + 2 * ru128(G) * in_item       # output tile, double-buffered
               + ru128(H) * 4                 # hidden f32
               + 3 * ru128(G) * 4)            # softmax temporaries f32
    w_bytes = 2 * (Tt * H + H * G + H + G) * jnp.dtype(w1.dtype).itemsize
    if packed_in:
        w_bytes += 2 * (128 * rpl * H + (rpl * H) * (rpl * G) + (rpl * G) ** 2) * 4
    if block_m is None:
        block_m = _choose_block_m(M, per_row, w_bytes, row_multiple, num_tc)
    grid_m = pl.cdiv(M, block_m)       # ragged M: last block padded/masked, no jnp.pad
    if packed_in:
        packed_in = (block_m % rpl == 0
                     and (grid_m == 1 or block_m % (rpl * min_sub) == 0))

    # ---- output layout --------------------------------------------------------
    if packed_in:
        # packed rows already hold rpl * G contiguous output elements; just store.
        out_shape = jax.ShapeDtypeStruct((M // rpl, rpl * G), x.dtype)
        out_spec = pl.BlockSpec((block_m // rpl, rpl * G), lambda i: (i, 0))
    elif (block_m * G) % (128 * min_sub) == 0 and (M * G) % 128 == 0:
        # lane-dense packed store: view the row-major (M, G) output as 128 lanes.
        out_shape = jax.ShapeDtypeStruct((M * G // 128, 128), x.dtype)
        out_spec = pl.BlockSpec((block_m * G // 128, 128), lambda i: (i, 0))
    else:
        out_shape = jax.ShapeDtypeStruct((M, G), x.dtype)
        out_spec = pl.BlockSpec((block_m, G), lambda i: (i, 0))

    compiler_params = pltpu.CompilerParams(
        dimension_semantics=("parallel",),
        vmem_limit_bytes=(64 if num_tc == 1 else 32) * 1024 * 1024,
    )

    if packed_in:
        eye = jnp.eye(rpl, dtype=w1.dtype)
        w1_bd = jnp.kron(eye, w1)                                   # (128, rpl*H)
        w2_bd = jnp.kron(jnp.eye(rpl, dtype=w2.dtype), w2)          # (rpl*H, rpl*G)
        b1_bd = jnp.tile(b1.reshape(-1), rpl).reshape(1, rpl * H)
        b2_bd = jnp.tile(b2.reshape(-1), rpl).reshape(1, rpl * G)
        gsum = jnp.kron(jnp.eye(rpl, dtype=jnp.float32),
                        jnp.ones((G, G), jnp.float32))               # group-sum matrix
        x_lane = x2d.reshape(M // rpl, 128)                           # free, row-major
        kernel = _gp_kernel_packed
        in_specs = [
            pl.BlockSpec((block_m // rpl, 128), lambda i: (i, 0)),    # x, lane dense
            pl.BlockSpec((128, rpl * H), lambda i: (0, 0)),           # block-diag W1
            pl.BlockSpec((1, rpl * H), lambda i: (0, 0)),
            pl.BlockSpec((rpl * H, rpl * G), lambda i: (0, 0)),       # block-diag W2
            pl.BlockSpec((1, rpl * G), lambda i: (0, 0)),
            pl.BlockSpec((rpl * G, rpl * G), lambda i: (0, 0)),       # group-sum
        ]
        args = (x_lane, w1_bd, b1_bd, w2_bd, b2_bd, gsum)
    elif h is None:
        kernel = _gp_kernel_plain
        in_specs = [
            pl.BlockSpec((block_m, T), lambda i: (i, 0)),
            pl.BlockSpec((Tt, H), lambda i: (0, 0)),
            pl.BlockSpec((1, H), lambda i: (0, 0)),
            pl.BlockSpec((H, G), lambda i: (0, 0)),
            pl.BlockSpec((1, G), lambda i: (0, 0)),
        ]
        args = (x2d, w1, b1r, w2, b2r)
    else:
        # TODO(synk): the PyTorch docstring says h is [batch, hidden_dim], but
        # torch.cat(dim=2) needs matching ndim; we accept [batch, num, h_dim]
        # and split W1's rows instead of concatenating activations in HBM.
        HD = h.shape[2]
        h2d = h.reshape(M, HD)
        kernel = _gp_kernel_plain_h
        in_specs = [
            pl.BlockSpec((block_m, T), lambda i: (i, 0)),
            pl.BlockSpec((block_m, HD), lambda i: (i, 0)),
            pl.BlockSpec((T, H), lambda i: (0, 0)),
            pl.BlockSpec((HD, H), lambda i: (0, 0)),
            pl.BlockSpec((1, H), lambda i: (0, 0)),
            pl.BlockSpec((H, G), lambda i: (0, 0)),
            pl.BlockSpec((1, G), lambda i: (0, 0)),
        ]
        args = (x2d, h2d, w1[:T], w1[T:], b1r, w2, b2r)

    out = pl.pallas_call(
        kernel,
        out_shape=out_shape,
        grid_spec=pltpu.PrefetchScalarGridSpec(
            num_scalar_prefetch=0,
            grid=(grid_m,),
            in_specs=in_specs,
            out_specs=out_spec,
        ),
        compiler_params=compiler_params,
    )(*args)

    return out.reshape(B, N, G)


# ----------------------------- test harness ---------------------------------


def _init_linear(key, fan_in, fan_out, dtype=jnp.float32):
    # torch.nn.Linear default init: U(-1/sqrt(fan_in), 1/sqrt(fan_in)).
    kw, kb = jax.random.split(key)
    bound = 1.0 / (fan_in ** 0.5)
    w = jax.random.uniform(kw, (fan_in, fan_out), dtype, minval=-bound, maxval=bound)
    b = jax.random.uniform(kb, (fan_out,), dtype, minval=-bound, maxval=bound)
    return w, b


def _ref_forward(x, w1, b1, w2, b2, h=None):
    xin = x if h is None else jnp.concatenate([x, h], axis=-1)
    B, N = xin.shape[0], xin.shape[1]
    x2d = xin.reshape(B * N, -1)
    hid = jnp.maximum(jnp.dot(x2d, w1, precision="highest") + b1, 0.0)
    logits = jnp.dot(hid, w2, precision="highest") + b2
    return jax.nn.softmax(logits, axis=-1).reshape(B, N, -1)


if __name__ == "__main__":
    key = jax.random.PRNGKey(0)
    k = jax.random.split(key, 8)
    hidden_dim, n_groups, tokens = 32, 8, 16
    checks = []

    # 1) f32, lane-dense block-diagonal input path (128 % tokens == 0).
    x = jax.random.normal(k[0], (8, 16, tokens), jnp.float32)
    w1, b1 = _init_linear(k[1], tokens, hidden_dim)
    w2, b2 = _init_linear(k[2], hidden_dim, n_groups)
    out = jax.block_until_ready(group_policy_forward(x, w1, b1, w2, b2))
    checks.append(("packed_f32", out, _ref_forward(x, w1, b1, w2, b2), 2e-3))

    # 2) f32, ragged M (no padding copy) + optional h via split W1 (plain path).
    h_dim = 16
    xh = jax.random.normal(k[3], (2, 9, tokens), jnp.float32)
    hh = jax.random.normal(k[4], (2, 9, h_dim), jnp.float32)
    w1c, b1c = _init_linear(k[5], tokens + h_dim, hidden_dim)
    out_h = jax.block_until_ready(group_policy_forward(xh, w1c, b1c, w2, b2, hh))
    checks.append(("ragged_h_f32", out_h, _ref_forward(xh, w1c, b1c, w2, b2, hh), 2e-3))

    # 3) bf16 I/O (f32 accumulation inside), lane-dense path, 16-row sublanes.
    xb = jax.random.normal(k[6], (16, 16, tokens), jnp.float32).astype(jnp.bfloat16)
    w1b, b1b, w2b, b2b = (a.astype(jnp.bfloat16) for a in (w1, b1, w2, b2))
    out_b = jax.block_until_ready(group_policy_forward(xb, w1b, b1b, w2b, b2b))
    ref_b = _ref_forward(xb.astype(jnp.float32), w1b.astype(jnp.float32),
                         b1b.astype(jnp.float32), w2b.astype(jnp.float32),
                         b2b.astype(jnp.float32))
    checks.append(("packed_bf16", out_b.astype(jnp.float32), ref_b, 2e-2))

    # 4) f32, tokens not a divisor of 128 -> plain input + lane-dense packed store.
    t2 = 24
    x2 = jax.random.normal(k[7], (8, 16, t2), jnp.float32)
    w12, b12 = _init_linear(k[1], t2, hidden_dim)
    out2 = jax.block_until_ready(group_policy_forward(x2, w12, b12, w2, b2))
    checks.append(("plain_packed_store_f32", out2, _ref_forward(x2, w12, b12, w2, b2), 2e-3))

    for name, got, want, tol in checks:
        assert got.shape == want.shape, (name, got.shape, want.shape)
        err = float(jnp.max(jnp.abs(got - want)))
        assert err <= tol, (name, err)

    print("KERNEL_OK")
</pallas_src>

<mosaic_0001>
module attributes {stable_mosaic.version = 11 : i64} {
  func.func @_gp_kernel_packed(%arg0: i32, %arg1: memref<16x128xf32, #tpu.memory_space<vmem>>, %arg2: memref<128x256xf32, #tpu.memory_space<vmem>>, %arg3: memref<1x256xf32, #tpu.memory_space<vmem>>, %arg4: memref<256x64xf32, #tpu.memory_space<vmem>>, %arg5: memref<1x64xf32, #tpu.memory_space<vmem>>, %arg6: memref<64x64xf32, #tpu.memory_space<vmem>>, %arg7: memref<16x64xf32, #tpu.memory_space<vmem>>) attributes {dimension_semantics = [#tpu.dimension_semantics<parallel>], iteration_bounds = array<i64: 1>, scalar_prefetch = 0 : i64, scratch_operands = 0 : i64, tpu.core_type = #tpu.core_type<tc>, window_params = [{transform_indices = @transform_0, window_bounds = array<i64: 16, 128>}, {pipeline_mode = #tpu.pipeline_mode<synchronous>, transform_indices = @transform_1, window_bounds = array<i64: 128, 256>}, {pipeline_mode = #tpu.pipeline_mode<synchronous>, transform_indices = @transform_2, window_bounds = array<i64: 1, 256>}, {pipeline_mode = #tpu.pipeline_mode<synchronous>, transform_indices = @transform_3, window_bounds = array<i64: 256, 64>}, {pipeline_mode = #tpu.pipeline_mode<synchronous>, transform_indices = @transform_4, window_bounds = array<i64: 1, 64>}, {pipeline_mode = #tpu.pipeline_mode<synchronous>, transform_indices = @transform_5, window_bounds = array<i64: 64, 64>}, {transform_indices = @transform_6, window_bounds = array<i64: 16, 64>}]} {
    %c0 = arith.constant 0 : index
    %c0_0 = arith.constant 0 : index
    %0 = vector.load %arg1[%c0, %c0_0] : memref<16x128xf32, #tpu.memory_space<vmem>>, vector<16x128xf32>
    %c0_1 = arith.constant 0 : index
    %c0_2 = arith.constant 0 : index
    %1 = vector.load %arg2[%c0_1, %c0_2] : memref<128x256xf32, #tpu.memory_space<vmem>>, vector<128x256xf32>
    %cst = arith.constant dense<0.000000e+00> : vector<16x256xf32>
    %2 = tpu.matmul %0, %1, %cst {dimension_numbers = #tpu.dot_dimension_numbers<[1], [0], [0], [1], [0, 0, 1, 1], [], []>} : vector<16x128xf32>, vector<128x256xf32>, vector<16x256xf32> -> vector<16x256xf32>
    %c0_3 = arith.constant 0 : index
    %c0_4 = arith.constant 0 : index
    %3 = vector.load %arg3[%c0_3, %c0_4] : memref<1x256xf32, #tpu.memory_space<vmem>>, vector<1x256xf32>
    %4 = vector.broadcast %3 : vector<1x256xf32> to vector<16x256xf32>
    %5 = arith.addf %2, %4 : vector<16x256xf32>
    %cst_5 = arith.constant 0.000000e+00 : f32
    %6 = vector.broadcast %cst_5 : f32 to vector<16x256xf32>
    %7 = arith.maximumf %5, %6 : vector<16x256xf32>
    %c0_6 = arith.constant 0 : index
    %c0_7 = arith.constant 0 : index
    %8 = vector.load %arg4[%c0_6, %c0_7] : memref<256x64xf32, #tpu.memory_space<vmem>>, vector<256x64xf32>
    %cst_8 = arith.constant dense<0.000000e+00> : vector<16x64xf32>
    %9 = tpu.matmul %7, %8, %cst_8 {dimension_numbers = #tpu.dot_dimension_numbers<[1], [0], [0], [1], [0, 0, 1, 1], [], []>} : vector<16x256xf32>, vector<256x64xf32>, vector<16x64xf32> -> vector<16x64xf32>
    %c0_9 = arith.constant 0 : index
    %c0_10 = arith.constant 0 : index
    %10 = vector.load %arg5[%c0_9, %c0_10] : memref<1x64xf32, #tpu.memory_space<vmem>>, vector<1x64xf32>
    %11 = vector.broadcast %10 : vector<1x64xf32> to vector<16x64xf32>
    %12 = arith.addf %9, %11 : vector<16x64xf32>
    %cst_11 = arith.constant dense<0xFF800000> : vector<16xf32>
    %13 = vector.multi_reduction <maximumf>, %12, %cst_11 [1] : vector<16x64xf32> to vector<16xf32>
    %14 = vector.shape_cast %13 : vector<16xf32> to vector<16x1xf32>
    %15 = vector.broadcast %14 : vector<16x1xf32> to vector<16x64xf32>
    %16 = arith.subf %12, %15 : vector<16x64xf32>
    %17 = math.exp %16 : vector<16x64xf32>
    %c0_12 = arith.constant 0 : index
    %c0_13 = arith.constant 0 : index
    %18 = vector.load %arg6[%c0_12, %c0_13] : memref<64x64xf32, #tpu.memory_space<vmem>>, vector<64x64xf32>
    %cst_14 = arith.constant dense<0.000000e+00> : vector<16x64xf32>
    %19 = tpu.matmul %17, %18, %cst_14 {dimension_numbers = #tpu.dot_dimension_numbers<[1], [0], [0], [1], [0, 0, 1, 1], [], []>} : vector<16x64xf32>, vector<64x64xf32>, vector<16x64xf32> -> vector<16x64xf32>
    %20 = arith.divf %17, %19 : vector<16x64xf32>
    %c0_15 = arith.constant 0 : index
    %c0_16 = arith.constant 0 : index
    %21 = vector.load %arg7[%c0_15, %c0_16] : memref<16x64xf32, #tpu.memory_space<vmem>>, vector<16x64xf32>
    tpu.vector_store %arg7[%c0_15, %c0_16], %20 {strides = array<i32>} : memref<16x64xf32, #tpu.memory_space<vmem>>, vector<16x64xf32>,
    return
  }
  func.func @transform_0(%arg0: i32) -> (i32, i32) {
    %c0_i32 = arith.constant 0 : i32
    %c0_i32_0 = arith.constant 0 : i32
    return %arg0, %c0_i32 : i32, i32
  }
  func.func @transform_1(%arg0: i32) -> (i32, i32) {
    %c0_i32 = arith.constant 0 : i32
    %c0_i32_0 = arith.constant 0 : i32
    %c0_i32_1 = arith.constant 0 : i32
    return %c0_i32, %c0_i32_0 : i32, i32
  }
  func.func @transform_2(%arg0: i32) -> (i32, i32) {
    %c0_i32 = arith.constant 0 : i32
    %c0_i32_0 = arith.constant 0 : i32
    %c0_i32_1 = arith.constant 0 : i32
    return %c0_i32, %c0_i32_0 : i32, i32
  }
  func.func @transform_3(%arg0: i32) -> (i32, i32) {
    %c0_i32 = arith.constant 0 : i32
    %c0_i32_0 = arith.constant 0 : i32
    %c0_i32_1 = arith.constant 0 : i32
    return %c0_i32, %c0_i32_0 : i32, i32
  }
  func.func @transform_4(%arg0: i32) -> (i32, i32) {
    %c0_i32 = arith.constant 0 : i32
    %c0_i32_0 = arith.constant 0 : i32
    %c0_i32_1 = arith.constant 0 : i32
    return %c0_i32, %c0_i32_0 : i32, i32
  }
  func.func @transform_5(%arg0: i32) -> (i32, i32) {
    %c0_i32 = arith.constant 0 : i32
    %c0_i32_0 = arith.constant 0 : i32
    %c0_i32_1 = arith.constant 0 : i32
    return %c0_i32, %c0_i32_0 : i32, i32
  }
  func.func @transform_6(%arg0: i32) -> (i32, i32) {
    %c0_i32 = arith.constant 0 : i32
    %c0_i32_0 = arith.constant 0 : i32
    return %arg0, %c0_i32 : i32, i32
  }
}

</mosaic_0001>

<llo_original>
// kernel: tile.13
$region0: #{tile.13}
  #allocation0 [shape = 's32[1]{0}', space=sflag, size = 0x4, scoped, tag = 'scoped memory for tile.13']
  %s0 = inlined_call_operand.vmem [shape: f32[32], index: 0, kind: input, shape index: {}]
  %s1 = inlined_call_operand.vmem [shape: f32[8,32], index: 1, kind: output, shape index: {}]
  // Predicated region
  $region2: #{tile.13} parent=0 // pred_check
    _
  $region3: #{tile.13} parent=0 // pred_check_branch
    %3 = sbr.rel (0) target = $region5
  $region4: #{tile.13} parent=0 // pred_region
    _
  $region5: #{tile.13} parent=0 // pred_fallthru
    _
  %v4 = vld [vmem:[%s0] ss:$0 sm:$0xff]
  %5 = vst [vmem:[%s1] sm:$0xff] %v4

// kernel: tile.14
$region0: #{tile.14}
  %s0 = inlined_call_operand.vmem [shape: f32[8,32], index: 0, kind: input, shape index: {}]
  %s1 = inlined_call_operand.hbm [shape: f32[1,256], index: 1, kind: output, shape index: {}]
  $region1: #{tile.14} parent=0
    #allocation0 [shape = 'u8[1024]{0}', space=vmem, size = 0x400, scoped, tag = 'operand span for operand 1']
    #allocation1 [shape = 's32[1]{0}', space=sflag, size = 0x4, scoped, tag = 'scoped memory for tile.14']
    #allocation2 [shape = 'u8[8192]{0}', space=vmem, size = 0x2000, scoped, tag = 'scoped mem for output reshape']
    %2 = vsyncpa [#allocation1], 0
    %s3 = smov 3
    %v4 = vld [vmem:[%s0] ss:$4 sm:%s3]
    %vm5 = vcmask 261120
    %6 = vst.msk [vmem:[#allocation2] ss:$8 sm:$0x3] %vm5, %v4
    %s7 = scalar_lea.vmem %s0, 3
    %s8 = smov 3
    %v9 = vld [vmem:[%s7] ss:$4 sm:%s8]
    %10 = vrot.lane.b32.xlu0 %v9, 96
    %v11 = vpop.permute.xlu0 %10
    %vm12 = vcmask 1048320
    %13 = vst.msk [vmem:[#allocation2] ss:$8 sm:$0x3] %vm12, %v11
    %s14 = scalar_lea.vmem %s0, 2
    %s15 = smov 3
    %v16 = vld [vmem:[%s14] ss:$4 sm:%s15]
    %17 = vrot.lane.b32.xlu0 %v16, 64
    %v18 = vpop.permute.xlu0 %17
    %vm19 = vcmask 785920
    %20 = vst.msk [vmem:[#allocation2] ss:$8 sm:$0x3] %vm19, %v18
    %s21 = scalar_lea.vmem %s0, 1
    %s22 = smov 3
    %v23 = vld [vmem:[%s21] ss:$4 sm:%s22]
    %24 = vrot.lane.b32.xlu0 %v23, 32
    %v25 = vpop.permute.xlu0 %24
    %vm26 = vcmask 523520
    %27 = vst.msk [vmem:[#allocation2] ss:$8 sm:$0x3] %vm26, %v25
    %s29 = sshllo.u32 0, 1
    %v31 = vld [vmem:[#allocation2] sm:%s29]
    %s32 = sshllo.u32 0, 1
    %33 = vst [vmem:[#allocation0] sm:%s32] %v31
    %s34 = scalar_lea.vmem [#allocation2], 8
    %v35 = vld [vmem:[%s34] sm:%s29]
    %s36 = sshllo.u32 0, 1
    %s37 = scalar_lea.vmem [#allocation0], 1
    %38 = vst [vmem:[%s37] sm:%s36] %v35
    %s40 = ssub.s32 32, 32
    %41 = vsyncadd [#allocation1], %s40
    %s43 = sshll.u32 [#allocation0], 4
    %s44 = int_to_ptr.vmem [resolvable:$true] %s43
    %46 = dma.vmem_to_hbm [thread:$0]  %s44, 32, %s1, [#allocation1]
    %47 = dma.done [#allocation1], 32
    %48 = vsyncpa [#allocation1], 1

// kernel: tile.18
$region0: #{tile.18}
  #allocation0 [shape = 's32[1]{0}', space=sflag, size = 0x4, scoped, tag = 'scoped memory for tile.18']
  %s0 = inlined_call_operand.vmem [shape: f32[8], index: 0, kind: input, shape index: {}]
  %s1 = inlined_call_operand.vmem [shape: f32[8,8], index: 1, kind: output, shape index: {}]
  // Predicated region
  $region2: #{tile.18} parent=0 // pred_check
    _
  $region3: #{tile.18} parent=0 // pred_check_branch
    %3 = sbr.rel (0) target = $region5
  $region4: #{tile.18} parent=0 // pred_region
    _
  $region5: #{tile.18} parent=0 // pred_fallthru
    _
  %v4 = vld [vmem:[%s0] ss:$0 sm:$0xff]
  %5 = vst [vmem:[%s1] sm:$0xff] %v4

// kernel: tile.19
$region0: #{tile.19}
  %s0 = inlined_call_operand.vmem [shape: f32[8,8], index: 0, kind: input, shape index: {}]
  %s1 = inlined_call_operand.hbm [shape: f32[1,64], index: 1, kind: output, shape index: {}]
  $region1: #{tile.19} parent=0
    #allocation0 [shape = 'u8[512]{0}', space=vmem, size = 0x400, scoped, tag = 'operand span for operand 1']
    #allocation1 [shape = 's32[1]{0}', space=sflag, size = 0x4, scoped, tag = 'scoped memory for tile.19']
    #allocation2 [shape = 'u8[4096]{0}', space=vmem, size = 0x1000, scoped, tag = 'scoped mem for output reshape']
    %2 = vsyncpa [#allocation1], 0
    %v3 = vld [vmem:[%s0] sm:$0x1]
    %vm4 = vcmask 64512
    %5 = vst.msk [vmem:[#allocation2] sm:$0x1] %vm4, %v3
    %s6 = scalar_lea.vmem %s0, 7
    %v7 = vld [vmem:[%s6] sm:$0x1]
    %8 = vrot.lane.b32.xlu0 %v7, 56
    %v9 = vpop.permute.xlu0 %8
    %vm10 = vcmask 523712
    %11 = vst.msk [vmem:[#allocation2] sm:$0x1] %vm10, %v9
    %s12 = scalar_lea.vmem %s0, 6
    %v13 = vld [vmem:[%s12] sm:$0x1]
    %14 = vrot.lane.b32.xlu0 %v13, 48
    %v15 = vpop.permute.xlu0 %14
    %vm16 = vcmask 458112
    %17 = vst.msk [vmem:[#allocation2] sm:$0x1] %vm16, %v15
    %s18 = scalar_lea.vmem %s0, 5
    %v19 = vld [vmem:[%s18] sm:$0x1]
    %20 = vrot.lane.b32.xlu0 %v19, 40
    %v21 = vpop.permute.xlu0 %20
    %vm22 = vcmask 392512
    %23 = vst.msk [vmem:[#allocation2] sm:$0x1] %vm22, %v21
    %s24 = scalar_lea.vmem %s0, 4
    %v25 = vld [vmem:[%s24] sm:$0x1]
    %26 = vrot.lane.b32.xlu0 %v25, 32
    %v27 = vpop.permute.xlu0 %26
    %vm28 = vcmask 326912
    %29 = vst.msk [vmem:[#allocation2] sm:$0x1] %vm28, %v27
    %s30 = scalar_lea.vmem %s0, 3
    %v31 = vld [vmem:[%s30] sm:$0x1]
    %32 = vrot.lane.b32.xlu0 %v31, 24
    %v33 = vpop.permute.xlu0 %32
    %vm34 = vcmask 261312
    %35 = vst.msk [vmem:[#allocation2] sm:$0x1] %vm34, %v33
    %s36 = scalar_lea.vmem %s0, 2
    %v37 = vld [vmem:[%s36] sm:$0x1]
    %38 = vrot.lane.b32.xlu0 %v37, 16
    %v39 = vpop.permute.xlu0 %38
    %vm40 = vcmask 195712
    %41 = vst.msk [vmem:[#allocation2] sm:$0x1] %vm40, %v39
    %s42 = scalar_lea.vmem %s0, 1
    %v43 = vld [vmem:[%s42] sm:$0x1]
    %44 = vrot.lane.b32.xlu0 %v43, 8
    %v45 = vpop.permute.xlu0 %44
    %vm46 = vcmask 130112
    %47 = vst.msk [vmem:[#allocation2] sm:$0x1] %vm46, %v45
    %s49 = sshllo.u32 0, 1
    %v51 = vld [vmem:[#allocation2] sm:%s49]
    %s52 = sshllo.u32 0, 1
    %53 = vst [vmem:[#allocation0] sm:%s52] %v51
    %s55 = ssub.s32 16, 16
    %56 = vsyncadd [#allocation1], %s55
    %s58 = sshll.u32 [#allocation0], 4
    %s59 = int_to_ptr.vmem [resolvable:$true] %s58
    %61 = dma.vmem_to_hbm [thread:$0]  %s59, 16, %s1, [#allocation1]
    %62 = dma.done [#allocation1], 16
    %63 = vsyncpa [#allocation1], 1

// kernel: group_policy_forward.1
$region0: #{group_policy_forward.1}
  #allocation0 [shape = 'u32[]', space=smem, size = 0x4, offset = 0x4, fixed_abs, tag = 'smem constant byte address 0x4 - core index']
  #allocation1 [shape = 'u32[144,128]{1,0:T(1,128)}', space=vmem, size = 0x12000, scoped, tag = 'internal scratch']
  %s0 = inlined_call_operand.hbm [shape: f32[16,128], index: 0, kind: input, shape index: {}]
  %s1 = inlined_call_operand.hbm [shape: f32[128,256], index: 1, kind: input, shape index: {}]
  %s2 = inlined_call_operand.hbm [shape: f32[1,256], index: 2, kind: input, shape index: {}]
  %s3 = inlined_call_operand.hbm [shape: f32[256,64], index: 3, kind: input, shape index: {}]
  %s4 = inlined_call_operand.hbm [shape: f32[1,64], index: 4, kind: input, shape index: {}]
  %s5 = inlined_call_operand.hbm [shape: f32[64,64], index: 5, kind: input, shape index: {}]
  %s6 = inlined_call_operand.hbm [shape: f32[16,64], index: 6, kind: output, shape index: {}]
  %s7 = sld [smem:[#allocation0]]
  $region58: #{group_policy_forward.1} parent=0
    _
  %s9 = ssub.s32 1, %s7
  %s10 = scalar_select 0, %s9, %s7
  $region1: #{group_policy_forward.1} parent=0
    #allocation2 [shape = 'u8[8192]{0}', space=vmem, size = 0x2000, scoped, tag = 'input window, operand 0, single buffered']
    #allocation3 [shape = 's32[1]{0}', space=sflag, size = 0x4, scoped, tag = 'scoped memory for group_policy_forward.1']
    #allocation4 [shape = 's32[1]{0}', space=sflag, size = 0x4, scoped, tag = 'scoped memory for group_policy_forward.1']
    #allocation5 [shape = 'u8[131072]{0}', space=vmem, size = 0x20000, scoped, tag = 'input window, operand 1, single buffered']
    #allocation6 [shape = 's32[1]{0}', space=sflag, size = 0x4, scoped, tag = 'scoped memory for group_policy_forward.1']
    #allocation7 [shape = 'u8[1024]{0}', space=vmem, size = 0x400, scoped, tag = 'input window, operand 2, single buffered']
    #allocation8 [shape = 'u8[131072]{0}', space=vmem, size = 0x20000, scoped, tag = 'input window, operand 3, single buffered']
    #allocation9 [shape = 's32[1]{0}', space=sflag, size = 0x4, scoped, tag = 'scoped memory for group_policy_forward.1']
    #allocation10 [shape = 'u8[512]{0}', space=vmem, size = 0x400, scoped, tag = 'input window, operand 4, single buffered']
    #allocation11 [shape = 'u8[32768]{0}', space=vmem, size = 0x8000, scoped, tag = 'input window, operand 5, single buffered']
    #allocation12 [shape = 's32[1]{0}', space=sflag, size = 0x4, scoped, tag = 'scoped memory for group_policy_forward.1']
    #allocation13 [shape = 'u8[8192]{0}', space=vmem, size = 0x2000, scoped, tag = 'output window, operand 0, single buffered']
    %11 = vsyncpa [#allocation3], 0
    %12 = vsyncpa [#allocation6], 0
    %13 = vsyncpa [#allocation9], 0
    %14 = vsyncpa [#allocation12], 0
    %15 = vsyncpa [#allocation4], 0
    // Predicated region
    $region2: #{group_policy_forward.1} parent=1 // pred_check
      _
    $region3: #{group_policy_forward.1} parent=1 // pred_check_branch
      %17 = sbr.rel (0) target = $region5
    $region4: #{group_policy_forward.1} parent=1 // pred_region
      %s19 = ssub.s32 256, 256
      %20 = vsyncadd [#allocation3], %s19
      %s21 = sshll.u32 [#allocation2], 4
      %s22 = int_to_ptr.vmem [resolvable:$true] %s21
      %27 = dma.hbm_to_vmem [thread:$0]  %s0, 256, %s22, [#allocation3], 128, 128, 8
    $region5: #{group_policy_forward.1} parent=1 // pred_fallthru
      _
    // Predicated region
    $region6: #{group_policy_forward.1} parent=1 // pred_check
      _
    $region7: #{group_policy_forward.1} parent=1 // pred_check_branch
      %29 = sbr.rel (0) target = $region9
    $region8: #{group_policy_forward.1} parent=1 // pred_region
      %s31 = ssub.s32 4096, 4096
      %32 = vsyncadd [#allocation6], %s31
      %s33 = sshll.u32 [#allocation5], 4
      %s34 = int_to_ptr.vmem [resolvable:$true] %s33
      %39 = dma.hbm_to_vmem [thread:$0]  %s1, 4096, %s34, [#allocation6], 256, 256, 16
    $region9: #{group_policy_forward.1} parent=1 // pred_fallthru
      _
    // Predicated region
    $region10: #{group_policy_forward.1} parent=1 // pred_check
      _
    $region11: #{group_policy_forward.1} parent=1 // pred_check_branch
      %41 = sbr.rel (0) target = $region13
    $region12: #{group_policy_forward.1} parent=1 // pred_region
      %s43 = ssub.s32 32, 32
      %44 = vsyncadd [#allocation6], %s43
      %s46 = sshll.u32 [#allocation7], 4
      %s47 = int_to_ptr.vmem [resolvable:$true] %s46
      %49 = dma.hbm_to_vmem [thread:$0]  %s2, 32, %s47, [#allocation6]
    $region13: #{group_policy_forward.1} parent=1 // pred_fallthru
      _
    // Predicated region
    $region14: #{group_policy_forward.1} parent=1 // pred_check
      _
    $region15: #{group_policy_forward.1} parent=1 // pred_check_branch
      %51 = sbr.rel (0) target = $region17
    $region16: #{group_policy_forward.1} parent=1 // pred_region
      %s53 = ssub.s32 4096, 4096
      %54 = vsyncadd [#allocation9], %s53
      %s55 = sshll.u32 [#allocation8], 4
      %s56 = int_to_ptr.vmem [resolvable:$true] %s55
      %61 = dma.hbm_to_vmem [thread:$0]  %s3, 4096, %s56, [#allocation9], 128, 128, 8
    $region17: #{group_policy_forward.1} parent=1 // pred_fallthru
      _
    // Predicated region
    $region18: #{group_policy_forward.1} parent=1 // pred_check
      _
    $region19: #{group_policy_forward.1} parent=1 // pred_check_branch
      %63 = sbr.rel (0) target = $region21
    $region20: #{group_policy_forward.1} parent=1 // pred_region
      %s65 = ssub.s32 16, 16
      %66 = vsyncadd [#allocation9], %s65
      %s68 = sshll.u32 [#allocation10], 4
      %s69 = int_to_ptr.vmem [resolvable:$true] %s68
      %71 = dma.hbm_to_vmem [thread:$0]  %s4, 16, %s69, [#allocation9]
    $region21: #{group_policy_forward.1} parent=1 // pred_fallthru
      _
    // Predicated region
    $region22: #{group_policy_forward.1} parent=1 // pred_check
      _
    $region23: #{group_policy_forward.1} parent=1 // pred_check_branch
      %73 = sbr.rel (0) target = $region25
    $region24: #{group_policy_forward.1} parent=1 // pred_region
      %s75 = ssub.s32 1024, 1024
      %76 = vsyncadd [#allocation12], %s75
      %s77 = sshll.u32 [#allocation11], 4
      %s78 = int_to_ptr.vmem [resolvable:$true] %s77
      %83 = dma.hbm_to_vmem [thread:$0]  %s5, 1024, %s78, [#allocation12], 128, 128, 8
    $region25: #{group_policy_forward.1} parent=1 // pred_fallthru
      _
    // Predicated region
    $region26: #{group_policy_forward.1} parent=1 // pred_check
      _
    $region27: #{group_policy_forward.1} parent=1 // pred_check_branch
      %85 = sbr.rel (0) target = $region29
    $region28: #{group_policy_forward.1} parent=1 // pred_region
      %86 = dma.done [#allocation3], 256
    $region29: #{group_policy_forward.1} parent=1 // pred_fallthru
      _
    // Predicated region
    $region30: #{group_policy_forward.1} parent=1 // pred_check
      _
    $region31: #{group_policy_forward.1} parent=1 // pred_check_branch
      %88 = sbr.rel (0) target = $region33
    $region32: #{group_policy_forward.1} parent=1 // pred_region
      %89 = dma.done [#allocation6], 4096
    $region33: #{group_policy_forward.1} parent=1 // pred_fallthru
      _
    // Predicated region
    $region34: #{group_policy_forward.1} parent=1 // pred_check
      _
    $region35: #{group_policy_forward.1} parent=1 // pred_check_branch
      %91 = sbr.rel (0) target = $region37
    $region36: #{group_policy_forward.1} parent=1 // pred_region
      %92 = dma.done [#allocation6], 32
    $region37: #{group_policy_forward.1} parent=1 // pred_fallthru
      _
    // Predicated region
    $region38: #{group_policy_forward.1} parent=1 // pred_check
      _
    $region39: #{group_policy_forward.1} parent=1 // pred_check_branch
      %94 = sbr.rel (0) target = $region41
    $region40: #{group_policy_forward.1} parent=1 // pred_region
      %95 = dma.done [#allocation9], 4096
    $region41: #{group_policy_forward.1} parent=1 // pred_fallthru
      _
    // Predicated region
    $region42: #{group_policy_forward.1} parent=1 // pred_check
      _
    $region43: #{group_policy_forward.1} parent=1 // pred_check_branch
      %97 = sbr.rel (0) target = $region45
    $region44: #{group_policy_forward.1} parent=1 // pred_region
      %98 = dma.done [#allocation9], 16
    $region45: #{group_policy_forward.1} parent=1 // pred_fallthru
      _
    // Predicated region
    $region46: #{group_policy_forward.1} parent=1 // pred_check
      _
    $region47: #{group_policy_forward.1} parent=1 // pred_check_branch
      %100 = sbr.rel (0) target = $region49
    $region48: #{group_policy_forward.1} parent=1 // pred_region
      %101 = dma.done [#allocation12], 1024
    $region49: #{group_policy_forward.1} parent=1 // pred_fallthru
      _
    %v102 = vld [vmem:[#allocation2] sm:$0xff]
    %v103 = vld [vmem:[#allocation2 + $0x8] sm:$0xff]
    %v104 = vld [vmem:[#allocation5] sm:$0xff]
    %v105 = vld [vmem:[#allocation5 + $0x8] sm:$0xff]
    %v106 = vld [vmem:[#allocation5 + $0x10] sm:$0xff]
    %v107 = vld [vmem:[#allocation5 + $0x18] sm:$0xff]
    %v108 = vld [vmem:[#allocation5 + $0x20] sm:$0xff]
    %v109 = vld [vmem:[#allocation5 + $0x28] sm:$0xff]
    %v110 = vld [vmem:[#allocation5 + $0x30] sm:$0xff]
    %v111 = vld [vmem:[#allocation5 + $0x38] sm:$0xff]
    %v112 = vld [vmem:[#allocation5 + $0x40] sm:$0xff]
    %v113 = vld [vmem:[#allocation5 + $0x48] sm:$0xff]
    %v114 = vld [vmem:[#allocation5 + $0x50] sm:$0xff]
    %v115 = vld [vmem:[#allocation5 + $0x58] sm:$0xff]
    %v116 = vld [vmem:[#allocation5 + $0x60] sm:$0xff]
    %v117 = vld [vmem:[#allocation5 + $0x68] sm:$0xff]
    %v118 = vld [vmem:[#allocation5 + $0x70] sm:$0xff]
    %v119 = vld [vmem:[#allocation5 + $0x78] sm:$0xff]
    %v120 = vld [vmem:[#allocation5 + $0x80] sm:$0xff]
    %v121 = vld [vmem:[#allocation5 + $0x88] sm:$0xff]
    %v122 = vld [vmem:[#allocation5 + $0x90] sm:$0xff]
    %v123 = vld [vmem:[#allocation5 + $0x98] sm:$0xff]
    %v124 = vld [vmem:[#allocation5 + $0xa0] sm:$0xff]
    %v125 = vld [vmem:[#allocation5 + $0xa8] sm:$0xff]
    %v126 = vld [vmem:[#allocation5 + $0xb0] sm:$0xff]
    %v127 = vld [vmem:[#allocation5 + $0xb8] sm:$0xff]
    %v128 = vld [vmem:[#allocation5 + $0xc0] sm:$0xff]
    %v129 = vld [vmem:[#allocation5 + $0xc8] sm:$0xff]
    %v130 = vld [vmem:[#allocation5 + $0xd0] sm:$0xff]
    %v131 = vld [vmem:[#allocation5 + $0xd8] sm:$0xff]
    %v132 = vld [vmem:[#allocation5 + $0xe0] sm:$0xff]
    %v133 = vld [vmem:[#allocation5 + $0xe8] sm:$0xff]
    %v134 = vld [vmem:[#allocation5 + $0xf0] sm:$0xff]
    %v135 = vld [vmem:[#allocation5 + $0xf8] sm:$0xff]
    %v136 = vld [vmem:[#allocation7] sm:$0x3]
    %v138 = vlaneseq
    %v139 = vshrl.u32 %v138, 7
    %v140 = vsub.s32 0, %v139
    %v141 = vrot.slane %v136, %v140
    %v142 = vlaneseq
    %v143 = vshrl.u32 %v142, 7
    %v144 = vsub.s32 1, %v143
    %v145 = vrot.slane %v136, %v144
    %148 = vmatprep.subr.mxu0 %v105
    %149 = vmatpush1.msra.mxu0 %v104
    %150 = vmatprep.subr.mxu0 %v107
    %151 = vmatpush1.msra.mxu0 %v106
    %152 = vmatprep.subr.mxu0 %v109
    %153 = vmatpush1.msra.mxu0 %v108
    %154 = vmatprep.subr.mxu0 %v111
    %155 = vmatpush1.msra.mxu0 %v110
    %156 = vmatprep.subr.mxu0 %v113
    %157 = vmatpush1.msra.mxu0 %v112
    %158 = vmatprep.subr.mxu0 %v115
    %159 = vmatpush1.msra.mxu0 %v114
    %160 = vmatprep.subr.mxu0 %v117
    %161 = vmatpush1.msra.mxu0 %v116
    %162 = vmatprep.subr.mxu0 %v119
    %163 = vmatpush1.msra.mxu0 %v118
    %164 = vmatprep.subr.mxu0 %v121
    %165 = vmatpush1.msra.mxu0 %v120
    %166 = vmatprep.subr.mxu0 %v123
    %167 = vmatpush1.msra.mxu0 %v122
    %168 = vmatprep.subr.mxu0 %v125
    %169 = vmatpush1.msra.mxu0 %v124
    %170 = vmatprep.subr.mxu0 %v127
    %171 = vmatpush1.msra.mxu0 %v126
    %172 = vmatprep.subr.mxu0 %v129
    %173 = vmatpush1.msra.mxu0 %v128
    %174 = vmatprep.subr.mxu0 %v131
    %175 = vmatpush1.msra.mxu0 %v130
    %176 = vmatprep.subr.mxu0 %v133
    %177 = vmatpush1.msra.mxu0 %v132
    %178 = vmatprep.subr.mxu0 %v135
    %179 = vmatpush1.msra.mxu0 %v134
    %180 = vmatprep.subr.mxu0 0.0
    %181 = vmatpush1.msra.mxu0 0.0
    %182 = vmatprep.subr.mxu0 0.0
    %183 = vmatpush1.msra.mxu0 0.0
    %184 = vmatprep.subr.mxu0 0.0
    %185 = vmatpush1.msra.mxu0 0.0
    %186 = vmatprep.subr.mxu0 0.0
    %187 = vmatpush1.msra.mxu0 0.0
    %188 = vmatprep.subr.mxu0 0.0
    %189 = vmatpush1.msra.mxu0 0.0
    %190 = vmatprep.subr.mxu0 0.0
    %191 = vmatpush1.msra.mxu0 0.0
    %192 = vmatprep.subr.mxu0 0.0
    %193 = vmatpush1.msra.mxu0 0.0
    %194 = vmatprep.subr.mxu0 0.0
    %195 = vmatpush1.msra.mxu0 0.0
    %196 = vmatprep.subr.mxu0 0.0
    %197 = vmatpush1.msra.mxu0 0.0
    %198 = vmatprep.subr.mxu0 0.0
    %199 = vmatpush1.msra.mxu0 0.0
    %200 = vmatprep.subr.mxu0 0.0
    %201 = vmatpush1.msra.mxu0 0.0
    %202 = vmatprep.subr.mxu0 0.0
    %203 = vmatpush1.msra.mxu0 0.0
    %204 = vmatprep.subr.mxu0 0.0
    %205 = vmatpush1.msra.mxu0 0.0
    %206 = vmatprep.subr.mxu0 0.0
    %207 = vmatpush1.msra.mxu0 0.0
    %208 = vmatprep.subr.mxu0 0.0
    %209 = vmatpush1.msra.mxu0 0.0
    %210 = vmatprep.subr.mxu0 0.0
    %211 = vmatpush1.msra.mxu0 0.0
    %212 = vmatprep.mubr.f32.mxu0 0.0
    %213 = vmatmul.mubr.f32.gmra.mrb[0].mxu0 %v102
    %v214 = vpop.f32.mrb[0].mxu0
    %v215 = vadd.f32 %v141, %v214
    %v216 = vpop.f32.mrb[0].mxu0
    %v217 = vadd.f32 %v145, %v216
    %218 = vmatprep.mubr.f32.mxu0 0.0
    %219 = vmatmul.mubr.f32.gmra.mrb[0].mxu0 %v103
    %v220 = vpop.f32.mrb[0].mxu0
    %v221 = vadd.f32 %v141, %v220
    %v222 = vpop.f32.mrb[0].mxu0
    %v223 = vadd.f32 %v145, %v222
    %224 = vdwg.mxu0
    %v225 = vmax.f32 %v215, 0.0
    %v226 = vmax.f32 %v217, 0.0
    %v227 = vmax.f32 %v221, 0.0
    %v228 = vmax.f32 %v223, 0.0
    %v229 = vld [vmem:[#allocation8] sm:$0xff]
    %v230 = vld [vmem:[#allocation8 + $0x8] sm:$0xff]
    %v231 = vld [vmem:[#allocation8 + $0x10] sm:$0xff]
    %v232 = vld [vmem:[#allocation8 + $0x18] sm:$0xff]
    %v233 = vld [vmem:[#allocation8 + $0x20] sm:$0xff]
    %v234 = vld [vmem:[#allocation8 + $0x28] sm:$0xff]
    %v235 = vld [vmem:[#allocation8 + $0x30] sm:$0xff]
    %v236 = vld [vmem:[#allocation8 + $0x38] sm:$0xff]
    %v237 = vld [vmem:[#allocation8 + $0x40] sm:$0xff]
    %v238 = vld [vmem:[#allocation8 + $0x48] sm:$0xff]
    %v239 = vld [vmem:[#allocation8 + $0x50] sm:$0xff]
    %v240 = vld [vmem:[#allocation8 + $0x58] sm:$0xff]
    %v241 = vld [vmem:[#allocation8 + $0x60] sm:$0xff]
    %v242 = vld [vmem:[#allocation8 + $0x68] sm:$0xff]
    %v243 = vld [vmem:[#allocation8 + $0x70] sm:$0xff]
    %v244 = vld [vmem:[#allocation8 + $0x78] sm:$0xff]
    %v245 = vld [vmem:[#allocation8 + $0x80] sm:$0xff]
    %v246 = vld [vmem:[#allocation8 + $0x88] sm:$0xff]
    %v247 = vld [vmem:[#allocation8 + $0x90] sm:$0xff]
    %v248 = vld [vmem:[#allocation8 + $0x98] sm:$0xff]
    %v249 = vld [vmem:[#allocation8 + $0xa0] sm:$0xff]
    %v250 = vld [vmem:[#allocation8 + $0xa8] sm:$0xff]
    %v251 = vld [vmem:[#allocation8 + $0xb0] sm:$0xff]
    %v252 = vld [vmem:[#allocation8 + $0xb8] sm:$0xff]
    %v253 = vld [vmem:[#allocation8 + $0xc0] sm:$0xff]
    %v254 = vld [vmem:[#allocation8 + $0xc8] sm:$0xff]
    %v255 = vld [vmem:[#allocation8 + $0xd0] sm:$0xff]
    %v256 = vld [vmem:[#allocation8 + $0xd8] sm:$0xff]
    %v257 = vld [vmem:[#allocation8 + $0xe0] sm:$0xff]
    %v258 = vld [vmem:[#allocation8 + $0xe8] sm:$0xff]
    %v259 = vld [vmem:[#allocation8 + $0xf0] sm:$0xff]
    %v260 = vld [vmem:[#allocation8 + $0xf8] sm:$0xff]
    %v261 = vld [vmem:[#allocation10] sm:$0x1]
    %v263 = vlaneseq
    %v264 = vshrl.u32 %v263, 7
    %v265 = vsub.s32 0, %v264
    %v266 = vrot.slane %v261, %v265
    %268 = vmatprep.subr.mxu0 0.0
    %269 = vmatpush1.msra.mxu0 %v229
    %270 = vmatprep.subr.mxu0 0.0
    %271 = vmatpush1.msra.mxu0 %v230
    %272 = vmatprep.subr.mxu0 0.0
    %273 = vmatpush1.msra.mxu0 %v231
    %274 = vmatprep.subr.mxu0 0.0
    %275 = vmatpush1.msra.mxu0 %v232
    %276 = vmatprep.subr.mxu0 0.0
    %277 = vmatpush1.msra.mxu0 %v233
    %278 = vmatprep.subr.mxu0 0.0
    %279 = vmatpush1.msra.mxu0 %v234
    %280 = vmatprep.subr.mxu0 0.0
    %281 = vmatpush1.msra.mxu0 %v235
    %282 = vmatprep.subr.mxu0 0.0
    %283 = vmatpush1.msra.mxu0 %v236
    %284 = vmatprep.subr.mxu0 0.0
    %285 = vmatpush1.msra.mxu0 %v237
    %286 = vmatprep.subr.mxu0 0.0
    %287 = vmatpush1.msra.mxu0 %v238
    %288 = vmatprep.subr.mxu0 0.0
    %289 = vmatpush1.msra.mxu0 %v239
    %290 = vmatprep.subr.mxu0 0.0
    %291 = vmatpush1.msra.mxu0 %v240
    %292 = vmatprep.subr.mxu0 0.0
    %293 = vmatpush1.msra.mxu0 %v241
    %294 = vmatprep.subr.mxu0 0.0
    %295 = vmatpush1.msra.mxu0 %v242
    %296 = vmatprep.subr.mxu0 0.0
    %297 = vmatpush1.msra.mxu0 %v243
    %298 = vmatprep.subr.mxu0 0.0
    %299 = vmatpush1.msra.mxu0 %v244
    %300 = vmatprep.subr.mxu0 0.0
    %301 = vmatpush1.msra.mxu0 %v245
    %302 = vmatprep.subr.mxu0 0.0
    %303 = vmatpush1.msra.mxu0 %v246
    %304 = vmatprep.subr.mxu0 0.0
    %305 = vmatpush1.msra.mxu0 %v247
    %306 = vmatprep.subr.mxu0 0.0
    %307 = vmatpush1.msra.mxu0 %v248
    %308 = vmatprep.subr.mxu0 0.0
    %309 = vmatpush1.msra.mxu0 %v249
    %310 = vmatprep.subr.mxu0 0.0
    %311 = vmatpush1.msra.mxu0 %v250
    %312 = vmatprep.subr.mxu0 0.0
    %313 = vmatpush1.msra.mxu0 %v251
    %314 = vmatprep.subr.mxu0 0.0
    %315 = vmatpush1.msra.mxu0 %v252
    %316 = vmatprep.subr.mxu0 0.0
    %317 = vmatpush1.msra.mxu0 %v253
    %318 = vmatprep.subr.mxu0 0.0
    %319 = vmatpush1.msra.mxu0 %v254
    %320 = vmatprep.subr.mxu0 0.0
    %321 = vmatpush1.msra.mxu0 %v255
    %322 = vmatprep.subr.mxu0 0.0
    %323 = vmatpush1.msra.mxu0 %v256
    %324 = vmatprep.subr.mxu0 0.0
    %325 = vmatpush1.msra.mxu0 %v257
    %326 = vmatprep.subr.mxu0 0.0
    %327 = vmatpush1.msra.mxu0 %v258
    %328 = vmatprep.subr.mxu0 0.0
    %329 = vmatpush1.msra.mxu0 %v259
    %330 = vmatprep.subr.mxu0 0.0
    %331 = vmatpush1.msra.mxu0 %v260
    %332 = vmatprep.mubr.f32.mxu0 %v226
    %333 = vmatmul.mubr.f32.gmra.mrb[0].mxu0 %v225
    %v334 = vpop.f32.mrb[0].mxu0
    %v335 = vadd.f32 %v266, %v334
    %v336 = vpop.f32.mrb[0].mxu0
    %337 = vmatprep.mubr.f32.mxu0 %v228
    %338 = vmatmul.mubr.f32.gmra.mrb[0].mxu0 %v227
    %v339 = vpop.f32.mrb[0].mxu0
    %v340 = vadd.f32 %v266, %v339
    %v341 = vpop.f32.mrb[0].mxu0
    %342 = vdwg.mxu0
    %vm343 = vcmask 523264
    %v344 = vsel %vm343, %v335, -inf
    %345 = vmax.xlane.f32.xlu0 %v344
    %v346 = vpop.xlane.xlu0 %345
    %v347 = vsel %vm343, %v340, -inf
    %348 = vmax.xlane.f32.xlu0 %v347
    %v349 = vpop.xlane.xlu0 %348
    %v350 = vsub.f32 %v335, %v346
    %v351 = vsub.f32 %v340, %v349
    %v352 = vmul.f32 %v350, 1.442695
    %v353 = vpow.pop %v352
    %v354 = vmul.f32 %v351, 1.442695
    %v355 = vpow.pop %v354
    %v356 = vld [vmem:[#allocation11] sm:$0xff]
    %v357 = vld [vmem:[#allocation11 + $0x8] sm:$0xff]
    %v358 = vld [vmem:[#allocation11 + $0x10] sm:$0xff]
    %v359 = vld [vmem:[#allocation11 + $0x18] sm:$0xff]
    %v360 = vld [vmem:[#allocation11 + $0x20] sm:$0xff]
    %v361 = vld [vmem:[#allocation11 + $0x28] sm:$0xff]
    %v362 = vld [vmem:[#allocation11 + $0x30] sm:$0xff]
    %v363 = vld [vmem:[#allocation11 + $0x38] sm:$0xff]
    %v365 = vsel %vm343, %v353, 0
    %v368 = vsel %vm343, %v355, 0
    %370 = vmatprep.subr.mxu0 0.0
    %371 = vmatpush1.msra.mxu0 %v356
    %372 = vmatprep.subr.mxu0 0.0
    %373 = vmatpush1.msra.mxu0 %v357
    %374 = vmatprep.subr.mxu0 0.0
    %375 = vmatpush1.msra.mxu0 %v358
    %376 = vmatprep.subr.mxu0 0.0
    %377 = vmatpush1.msra.mxu0 %v359
    %378 = vmatprep.subr.mxu0 0.0
    %379 = vmatpush1.msra.mxu0 %v360
    %380 = vmatprep.subr.mxu0 0.0
    %381 = vmatpush1.msra.mxu0 %v361
    %382 = vmatprep.subr.mxu0 0.0
    %383 = vmatpush1.msra.mxu0 %v362
    %384 = vmatprep.subr.mxu0 0.0
    %385 = vmatpush1.msra.mxu0 %v363
    %386 = vmatprep.subr.mxu0 0.0
    %387 = vmatpush1.msra.mxu0 0.0
    %388 = vmatprep.subr.mxu0 0.0
    %389 = vmatpush1.msra.mxu0 0.0
    %390 = vmatprep.subr.mxu0 0.0
    %391 = vmatpush1.msra.mxu0 0.0
    %392 = vmatprep.subr.mxu0 0.0
    %393 = vmatpush1.msra.mxu0 0.0
    %394 = vmatprep.subr.mxu0 0.0
    %395 = vmatpush1.msra.mxu0 0.0
    %396 = vmatprep.subr.mxu0 0.0
    %397 = vmatpush1.msra.mxu0 0.0
    %398 = vmatprep.subr.mxu0 0.0
    %399 = vmatpush1.msra.mxu0 0.0
    %400 = vmatprep.subr.mxu0 0.0
    %401 = vmatpush1.msra.mxu0 0.0
    %402 = vmatprep.subr.mxu0 0.0
    %403 = vmatpush1.msra.mxu0 0.0
    %404 = vmatprep.subr.mxu0 0.0
    %405 = vmatpush1.msra.mxu0 0.0
    %406 = vmatprep.subr.mxu0 0.0
    %407 = vmatpush1.msra.mxu0 0.0
    %408 = vmatprep.subr.mxu0 0.0
    %409 = vmatpush1.msra.mxu0 0.0
    %410 = vmatprep.subr.mxu0 0.0
    %411 = vmatpush1.msra.mxu0 0.0
    %412 = vmatprep.subr.mxu0 0.0
    %413 = vmatpush1.msra.mxu0 0.0
    %414 = vmatprep.subr.mxu0 0.0
    %415 = vmatpush1.msra.mxu0 0.0
    %416 = vmatprep.subr.mxu0 0.0
    %417 = vmatpush1.msra.mxu0 0.0
    %418 = vmatprep.subr.mxu0 0.0
    %419 = vmatpush1.msra.mxu0 0.0
    %420 = vmatprep.subr.mxu0 0.0
    %421 = vmatpush1.msra.mxu0 0.0
    %422 = vmatprep.subr.mxu0 0.0
    %423 = vmatpush1.msra.mxu0 0.0
    %424 = vmatprep.subr.mxu0 0.0
    %425 = vmatpush1.msra.mxu0 0.0
    %426 = vmatprep.subr.mxu0 0.0
    %427 = vmatpush1.msra.mxu0 0.0
    %428 = vmatprep.subr.mxu0 0.0
    %429 = vmatpush1.msra.mxu0 0.0
    %430 = vmatprep.subr.mxu0 0.0
    %431 = vmatpush1.msra.mxu0 0.0
    %432 = vmatprep.subr.mxu0 0.0
    %433 = vmatpush1.msra.mxu0 0.0
    %434 = vmatprep.mubr.f32.mxu0 0.0
    %435 = vmatmul.mubr.f32.gmra.mrb[0].mxu0 %v365
    %v436 = vpop.f32.mrb[0].mxu0
    %v437 = vadd.f32 0.0, %v436
    %v438 = vpop.f32.mrb[0].mxu0
    %439 = vmatprep.mubr.f32.mxu0 0.0
    %440 = vmatmul.mubr.f32.gmra.mrb[0].mxu0 %v368
    %v441 = vpop.f32.mrb[0].mxu0
    %v442 = vadd.f32 0.0, %v441
    %v443 = vpop.f32.mrb[0].mxu0
    %444 = vdwg.mxu0
    %v445 = vrcp.pop %v437
    %v446 = vmul.f32 %v353, %v445
    %v447 = vrcp.pop %v442
    %v448 = vmul.f32 %v355, %v447
    %449 = vst.msk [vmem:[#allocation13] sm:$0xff] %vm343, %v446
    %450 = vst.msk [vmem:[#allocation13 + $0x8] sm:$0xff] %vm343, %v448
    // Predicated region
    $region50: #{group_policy_forward.1} parent=1 // pred_check
      _
    $region51: #{group_policy_forward.1} parent=1 // pred_check_branch
      %452 = sbr.rel (0) target = $region53
    $region52: #{group_policy_forward.1} parent=1 // pred_region
      %s454 = ssub.s32 256, 256
      %455 = vsyncadd [#allocation4], %s454
      %s456 = sshll.u32 [#allocation13], 4
      %s457 = int_to_ptr.vmem [resolvable:$true] %s456
      %462 = dma.vmem_to_hbm [thread:$0]  %s457, 256, %s6, [#allocation4], 128, 128, 8
    $region53: #{group_policy_forward.1} parent=1 // pred_fallthru
      _
    // Predicated region
    $region54: #{group_policy_forward.1} parent=1 // pred_check
      _
    $region55: #{group_policy_forward.1} parent=1 // pred_check_branch
      %464 = sbr.rel (0) target = $region57
    $region56: #{group_policy_forward.1} parent=1 // pred_region
      %465 = dma.done [#allocation4], 256
    $region57: #{group_policy_forward.1} parent=1 // pred_fallthru
      _
    %466 = vsyncpa [#allocation3], 1
    %467 = vsyncpa [#allocation6], 1
    %468 = vsyncpa [#allocation9], 1
    %469 = vsyncpa [#allocation12], 1
    %470 = vsyncpa [#allocation4], 1

</llo_original>
